<compile_context>
chip_gen: v5e
topology: v5e:2x2
jax: 0.10.0
libtpu: 0.0.40
codegen_flags: <defaults>
</compile_context>

<pallas_src>
import math

import jax
import jax.numpy as jnp
from jax.experimental import pallas as pl
from jax.experimental.pallas import tpu as pltpu

LEAKY_SLOPE = 0.01  # torch.nn.LeakyReLU default negative_slope


def _leaky_relu(v):
    # 2 VALU ops (mul + max) instead of compare + mul + select.
    return jnp.maximum(v, LEAKY_SLOPE * v)


def clamp_kernel(x_ref, bmin_ref, d_ref, invd_ref, o_ref):
    # x_ref   : (TR, TS)  tile of the flattened (N*C, prod(spatial)) input
    # bmin_ref: (TR, 1)   per-row (= per channel, per batch) lower bias (f32)
    # d_ref   : (TR, 1)   per-row range d = bmax - bmin (f32)
    # invd_ref: (TR, 1)   per-row exact reciprocal 1/d (f32)
    x = x_ref[...].astype(jnp.float32)
    bmin = bmin_ref[...]
    d = d_ref[...]
    inv_d = invd_ref[...]

    t = _leaky_relu(x - bmin)          # leaky_relu(x - bmin)
    a = _leaky_relu(d - t)             # leaky_relu(-leaky_relu(x - bmin) + d)
    # (a - d/2) / d  ==  a * (1/d) - 0.5   (exact 1/d computed once per row)
    o_ref[...] = (a * inv_d - 0.5).astype(o_ref.dtype)


def clamp_layer_forward(x, bias_min, bias_max):
    """x: (N, C, *spatial).  bias_min/bias_max: (C,) per-channel params."""
    N, C = x.shape[0], x.shape[1]
    assert C == bias_min.shape[0] == bias_max.shape[0], (
        "input channel count must match the per-channel bias parameters")
    spatial = x.shape[2:]
    S = max(1, math.prod(spatial))
    R = N * C

    x2 = x.reshape(R, S)

    # Per-channel scalars, kept in f32 regardless of x dtype, broadcast to rows.
    bmin = bias_min.astype(jnp.float32).reshape(C)
    bmax = bias_max.astype(jnp.float32).reshape(C)
    d = bmax - bmin
    inv_d = 1.0 / d
    bmin_r = jnp.broadcast_to(bmin[None, :], (N, C)).reshape(R, 1)
    d_r = jnp.broadcast_to(d[None, :], (N, C)).reshape(R, 1)
    invd_r = jnp.broadcast_to(inv_d[None, :], (N, C)).reshape(R, 1)

    # --- tile selection -----------------------------------------------------
    elem_bytes = jnp.dtype(x.dtype).itemsize
    block_budget = 2 << 20  # ~2 MiB per input block

    # Lane (S) tile: multiple of 128 whenever legal; otherwise full dim if it
    # fits the budget; otherwise a 128-multiple with a masked trailing block.
    max_lanes = max(128, ((block_budget // (8 * elem_bytes)) // 128) * 128)
    if S % 128 == 0:
        TS = min(S, max_lanes)
    elif S * 8 * elem_bytes <= block_budget:
        TS = S                      # full array dim is always a legal extent
    else:
        TS = max_lanes              # trailing partial block padded/masked

    # Row (sublane) tile: multiple of 8 when legal, sized to the budget.
    max_rows = max(8, ((block_budget // (TS * elem_bytes)) // 8) * 8)
    if R % 8 == 0:
        TR = min(R, max_rows)
    elif R * TS * elem_bytes <= block_budget:
        TR = R                      # full array dim is always a legal extent
    else:
        TR = max_rows               # trailing partial block padded/masked

    grid = (pl.cdiv(R, TR), pl.cdiv(S, TS))

    out = pl.pallas_call(
        clamp_kernel,
        out_shape=jax.ShapeDtypeStruct((R, S), x.dtype),
        grid_spec=pltpu.PrefetchScalarGridSpec(
            num_scalar_prefetch=0,
            grid=grid,
            in_specs=[
                pl.BlockSpec((TR, TS), lambda r, s: (r, s)),
                pl.BlockSpec((TR, 1), lambda r, s: (r, 0)),
                pl.BlockSpec((TR, 1), lambda r, s: (r, 0)),
                pl.BlockSpec((TR, 1), lambda r, s: (r, 0)),
            ],
            out_specs=pl.BlockSpec((TR, TS), lambda r, s: (r, s)),
        ),
        compiler_params=pltpu.CompilerParams(
            dimension_semantics=("parallel", "parallel")),
    )(x2, bmin_r, d_r, invd_r)

    return out.reshape((N, C) + spatial)


def clamp_layer_reference(x, bias_min, bias_max):
    C = bias_min.shape[0]
    shp = (1, C) + (1,) * (x.ndim - 2)
    bmin = bias_min.astype(jnp.float32).reshape(shp)
    bmax = bias_max.astype(jnp.float32).reshape(shp)
    d = bmax - bmin
    lr = lambda v: jnp.where(v >= 0, v, LEAKY_SLOPE * v)
    xf = x.astype(jnp.float32)
    return ((lr(-lr(xf - bmin) + d) - d / 2) / d).astype(x.dtype)


if __name__ == "__main__":
    # CT_net default 'hu' table (scale=1) -> 9 channels of (min, max) HU ranges.
    hu = {'4': [250, 3000], '3': [90, 300], '2': [10, 100], '1': [0, 50],
          '0': [-25, 25], '-1': [-50, 0], '-2': [-100, -10], '-3': [-300, -90],
          '-4': [-3000, -250]}
    scale = 1.0
    mins_l, maxs_l = [], []
    for lo, hi in hu.values():
        c = (hi - lo) / 2.0
        mins_l.append(scale * (lo - c) + c)
        maxs_l.append(scale * (hi - c) + c)
    mins = jnp.array(mins_l, dtype=jnp.float32)
    maxs = jnp.array(maxs_l, dtype=jnp.float32)

    # Small, module-consistent shapes: N=2, C=9 (len(hu)), spatial 4x8x8.
    N, C, D, H, W = 2, 9, 4, 8, 8
    key = jax.random.PRNGKey(0)
    x = jax.random.normal(key, (N, C, D, H, W), dtype=jnp.float32) * 1000.0

    out = clamp_layer_forward(x, mins, maxs)
    out = jax.block_until_ready(out)

    ref = clamp_layer_reference(x, mins, maxs)
    assert out.shape == (N, C, D, H, W)
    assert jnp.allclose(out, ref, atol=1e-5, rtol=1e-5)

    print("KERNEL_OK")
</pallas_src>

<mosaic_0001>
module attributes {stable_mosaic.version = 11 : i64} {
  func.func @clamp_kernel(%arg0: i32, %arg1: i32, %arg2: memref<18x256xf32, #tpu.memory_space<vmem>>, %arg3: memref<18x1xf32, #tpu.memory_space<vmem>>, %arg4: memref<18x1xf32, #tpu.memory_space<vmem>>, %arg5: memref<18x1xf32, #tpu.memory_space<vmem>>, %arg6: memref<18x256xf32, #tpu.memory_space<vmem>>) attributes {dimension_semantics = [#tpu.dimension_semantics<parallel>, #tpu.dimension_semantics<parallel>], iteration_bounds = array<i64: 1, 1>, scalar_prefetch = 0 : i64, scratch_operands = 0 : i64, tpu.core_type = #tpu.core_type<tc>, window_params = [{transform_indices = @transform_0, window_bounds = array<i64: 18, 256>}, {transform_indices = @transform_1, window_bounds = array<i64: 18, 1>}, {transform_indices = @transform_2, window_bounds = array<i64: 18, 1>}, {transform_indices = @transform_3, window_bounds = array<i64: 18, 1>}, {transform_indices = @transform_4, window_bounds = array<i64: 18, 256>}]} {
    %c0 = arith.constant 0 : index
    %c0_0 = arith.constant 0 : index
    %0 = vector.load %arg2[%c0, %c0_0] : memref<18x256xf32, #tpu.memory_space<vmem>>, vector<18x256xf32>
    %c0_1 = arith.constant 0 : index
    %c0_2 = arith.constant 0 : index
    %1 = vector.load %arg3[%c0_1, %c0_2] : memref<18x1xf32, #tpu.memory_space<vmem>>, vector<18x1xf32>
    %c0_3 = arith.constant 0 : index
    %c0_4 = arith.constant 0 : index
    %2 = vector.load %arg4[%c0_3, %c0_4] : memref<18x1xf32, #tpu.memory_space<vmem>>, vector<18x1xf32>
    %c0_5 = arith.constant 0 : index
    %c0_6 = arith.constant 0 : index
    %3 = vector.load %arg5[%c0_5, %c0_6] : memref<18x1xf32, #tpu.memory_space<vmem>>, vector<18x1xf32>
    %4 = vector.broadcast %1 : vector<18x1xf32> to vector<18x256xf32>
    %5 = arith.subf %0, %4 : vector<18x256xf32>
    %cst = arith.constant 0.00999999977 : f32
    %6 = vector.broadcast %cst : f32 to vector<18x256xf32>
    %7 = arith.mulf %6, %5 : vector<18x256xf32>
    %8 = arith.maximumf %5, %7 : vector<18x256xf32>
    %9 = vector.broadcast %2 : vector<18x1xf32> to vector<18x256xf32>
    %10 = arith.subf %9, %8 : vector<18x256xf32>
    %cst_7 = arith.constant 0.00999999977 : f32
    %11 = vector.broadcast %cst_7 : f32 to vector<18x256xf32>
    %12 = arith.mulf %11, %10 : vector<18x256xf32>
    %13 = arith.maximumf %10, %12 : vector<18x256xf32>
    %14 = vector.broadcast %3 : vector<18x1xf32> to vector<18x256xf32>
    %15 = arith.mulf %13, %14 : vector<18x256xf32>
    %cst_8 = arith.constant 5.000000e-01 : f32
    %16 = vector.broadcast %cst_8 : f32 to vector<18x256xf32>
    %17 = arith.subf %15, %16 : vector<18x256xf32>
    %c0_9 = arith.constant 0 : index
    %c0_10 = arith.constant 0 : index
    %18 = vector.load %arg6[%c0_9, %c0_10] : memref<18x256xf32, #tpu.memory_space<vmem>>, vector<18x256xf32>
    tpu.vector_store %arg6[%c0_9, %c0_10], %17 {strides = array<i32>} : memref<18x256xf32, #tpu.memory_space<vmem>>, vector<18x256xf32>,
    return
  }
  func.func @transform_0(%arg0: i32, %arg1: i32) -> (i32, i32) {
    %c0_i32 = arith.constant 0 : i32
    return %arg0, %arg1 : i32, i32
  }
  func.func @transform_1(%arg0: i32, %arg1: i32) -> (i32, i32) {
    %c0_i32 = arith.constant 0 : i32
    %c0_i32_0 = arith.constant 0 : i32
    return %arg0, %c0_i32 : i32, i32
  }
  func.func @transform_2(%arg0: i32, %arg1: i32) -> (i32, i32) {
    %c0_i32 = arith.constant 0 : i32
    %c0_i32_0 = arith.constant 0 : i32
    return %arg0, %c0_i32 : i32, i32
  }
  func.func @transform_3(%arg0: i32, %arg1: i32) -> (i32, i32) {
    %c0_i32 = arith.constant 0 : i32
    %c0_i32_0 = arith.constant 0 : i32
    return %arg0, %c0_i32 : i32, i32
  }
  func.func @transform_4(%arg0: i32, %arg1: i32) -> (i32, i32) {
    %c0_i32 = arith.constant 0 : i32
    return %arg0, %arg1 : i32, i32
  }
}

</mosaic_0001>

<llo_original>
// kernel: tpu_custom_call.1
$region0: #{tpu_custom_call.1}
  #allocation0 [shape = 'u32[]', space=smem, size = 0x4, offset = 0x4, fixed_abs, tag = 'smem constant byte address 0x4 - core index']
  #allocation1 [shape = 'u32[72,128]{1,0:T(1,128)}', space=vmem, size = 0x9000, scoped, tag = 'internal scratch']
  %s0 = inlined_call_operand.vmem [shape: f32[18,256], index: 0, kind: input, shape index: {}]
  %s1 = inlined_call_operand.vmem [shape: f32[18,1], index: 1, kind: input, shape index: {}]
  %s2 = inlined_call_operand.vmem [shape: f32[18,1], index: 2, kind: input, shape index: {}]
  %s3 = inlined_call_operand.vmem [shape: f32[18,1], index: 3, kind: input, shape index: {}]
  %s4 = inlined_call_operand.hbm [shape: f32[18,256], index: 4, kind: output, shape index: {}]
  %s5 = sld [smem:[#allocation0]]
  $region26: #{tpu_custom_call.1} parent=0
    _
  %s7 = ssub.s32 1, %s5
  %s8 = scalar_select 0, %s7, %s5
  $region1: #{tpu_custom_call.1} parent=0
    #allocation2 [shape = 'u8[24576]{0}', space=vmem, size = 0x6000, scoped, tag = 'output window, operand 0, single buffered']
    #allocation3 [shape = 's32[1]{0}', space=sflag, size = 0x4, scoped, tag = 'scoped memory for tpu_custom_call.1']
    %9 = vsyncpa [#allocation3], 0
    // Predicated region
    $region2: #{tpu_custom_call.1} parent=1 // pred_check
      _
    $region3: #{tpu_custom_call.1} parent=1 // pred_check_branch
      %11 = sbr.rel (0) target = $region5
    $region4: #{tpu_custom_call.1} parent=1 // pred_region
      _
    $region5: #{tpu_custom_call.1} parent=1 // pred_fallthru
      _
    // Predicated region
    $region6: #{tpu_custom_call.1} parent=1 // pred_check
      _
    $region7: #{tpu_custom_call.1} parent=1 // pred_check_branch
      %13 = sbr.rel (0) target = $region9
    $region8: #{tpu_custom_call.1} parent=1 // pred_region
      _
    $region9: #{tpu_custom_call.1} parent=1 // pred_fallthru
      _
    // Predicated region
    $region10: #{tpu_custom_call.1} parent=1 // pred_check
      _
    $region11: #{tpu_custom_call.1} parent=1 // pred_check_branch
      %15 = sbr.rel (0) target = $region13
    $region12: #{tpu_custom_call.1} parent=1 // pred_region
      _
    $region13: #{tpu_custom_call.1} parent=1 // pred_fallthru
      _
    // Predicated region
    $region14: #{tpu_custom_call.1} parent=1 // pred_check
      _
    $region15: #{tpu_custom_call.1} parent=1 // pred_check_branch
      %17 = sbr.rel (0) target = $region17
    $region16: #{tpu_custom_call.1} parent=1 // pred_region
      _
    $region17: #{tpu_custom_call.1} parent=1 // pred_fallthru
      _
    %v18 = vld [vmem:[%s0] sm:$0xff]
    %v19 = vld [vmem:[%s0 + $0x8] sm:$0xff]
    %v20 = vld [vmem:[%s0 + $0x10] sm:$0xff]
    %v21 = vld [vmem:[%s0 + $0x18] sm:$0xff]
    %v22 = vld [vmem:[%s0 + $0x20] sm:$0x3]
    %v23 = vld [vmem:[%s0 + $0x28] sm:$0x3]
    %v24 = vld [vmem:[%s1] sm:$0xff]
    %v25 = vld [vmem:[%s1 + $0x8] sm:$0xff]
    %v26 = vld [vmem:[%s1 + $0x10] sm:$0x3]
    %v27 = vld [vmem:[%s2] sm:$0xff]
    %v28 = vld [vmem:[%s2 + $0x8] sm:$0xff]
    %v29 = vld [vmem:[%s2 + $0x10] sm:$0x3]
    %v30 = vld [vmem:[%s3] sm:$0xff]
    %v31 = vld [vmem:[%s3 + $0x8] sm:$0xff]
    %v32 = vld [vmem:[%s3 + $0x10] sm:$0x3]
    %34 = vset.pattern.permute.xlu0 0
    %35 = vperm.xlu0 %34, %v24
    %v36 = vpop.permute.xlu0 %35
    %39 = vset.pattern.permute.xlu0 0
    %40 = vperm.xlu0 %39, %v25
    %v41 = vpop.permute.xlu0 %40
    %44 = vset.pattern.permute.xlu0 0
    %45 = vperm.xlu0 %44, %v26
    %v46 = vpop.permute.xlu0 %45
    %v48 = vsub.f32 %v18, %v36
    %v49 = vsub.f32 %v19, %v36
    %v50 = vsub.f32 %v20, %v41
    %v51 = vsub.f32 %v21, %v41
    %v52 = vsub.f32 %v22, %v46
    %v53 = vsub.f32 %v23, %v46
    %v54 = vmul.f32 %v48, 0.01
    %v55 = vmul.f32 %v49, 0.01
    %v56 = vmul.f32 %v50, 0.01
    %v57 = vmul.f32 %v51, 0.01
    %v58 = vmul.f32 %v52, 0.01
    %v59 = vmul.f32 %v53, 0.01
    %v60 = vmax.f32 %v48, %v54
    %v61 = vmax.f32 %v49, %v55
    %v62 = vmax.f32 %v50, %v56
    %v63 = vmax.f32 %v51, %v57
    %v64 = vmax.f32 %v52, %v58
    %v65 = vmax.f32 %v53, %v59
    %67 = vset.pattern.permute.xlu0 0
    %68 = vperm.xlu0 %67, %v27
    %v69 = vpop.permute.xlu0 %68
    %72 = vset.pattern.permute.xlu0 0
    %73 = vperm.xlu0 %72, %v28
    %v74 = vpop.permute.xlu0 %73
    %77 = vset.pattern.permute.xlu0 0
    %78 = vperm.xlu0 %77, %v29
    %v79 = vpop.permute.xlu0 %78
    %v81 = vsub.f32 %v69, %v60
    %v82 = vsub.f32 %v69, %v61
    %v83 = vsub.f32 %v74, %v62
    %v84 = vsub.f32 %v74, %v63
    %v85 = vsub.f32 %v79, %v64
    %v86 = vsub.f32 %v79, %v65
    %v87 = vmul.f32 %v81, 0.01
    %v88 = vmul.f32 %v82, 0.01
    %v89 = vmul.f32 %v83, 0.01
    %v90 = vmul.f32 %v84, 0.01
    %v91 = vmul.f32 %v85, 0.01
    %v92 = vmul.f32 %v86, 0.01
    %v93 = vmax.f32 %v81, %v87
    %v94 = vmax.f32 %v82, %v88
    %v95 = vmax.f32 %v83, %v89
    %v96 = vmax.f32 %v84, %v90
    %v97 = vmax.f32 %v85, %v91
    %v98 = vmax.f32 %v86, %v92
    %100 = vset.pattern.permute.xlu0 0
    %101 = vperm.xlu0 %100, %v30
    %v102 = vpop.permute.xlu0 %101
    %105 = vset.pattern.permute.xlu0 0
    %106 = vperm.xlu0 %105, %v31
    %v107 = vpop.permute.xlu0 %106
    %110 = vset.pattern.permute.xlu0 0
    %111 = vperm.xlu0 %110, %v32
    %v112 = vpop.permute.xlu0 %111
    %v114 = vmul.f32 %v93, %v102
    %v115 = vmul.f32 %v94, %v102
    %v116 = vmul.f32 %v95, %v107
    %v117 = vmul.f32 %v96, %v107
    %v118 = vmul.f32 %v97, %v112
    %v119 = vmul.f32 %v98, %v112
    %v120 = vsub.f32 %v114, 0.5
    %v121 = vsub.f32 %v115, 0.5
    %v122 = vsub.f32 %v116, 0.5
    %v123 = vsub.f32 %v117, 0.5
    %v124 = vsub.f32 %v118, 0.5
    %v125 = vsub.f32 %v119, 0.5
    %126 = vst [vmem:[#allocation2] sm:$0xff] %v120
    %127 = vst [vmem:[#allocation2 + $0x8] sm:$0xff] %v121
    %128 = vst [vmem:[#allocation2 + $0x10] sm:$0xff] %v122
    %129 = vst [vmem:[#allocation2 + $0x18] sm:$0xff] %v123
    %130 = vst [vmem:[#allocation2 + $0x20] sm:$0x3] %v124
    %131 = vst [vmem:[#allocation2 + $0x28] sm:$0x3] %v125
    // Predicated region
    $region18: #{tpu_custom_call.1} parent=1 // pred_check
      _
    $region19: #{tpu_custom_call.1} parent=1 // pred_check_branch
      %133 = sbr.rel (0) target = $region21
    $region20: #{tpu_custom_call.1} parent=1 // pred_region
      %135 = vsyncadd [#allocation3], 0
      %s136 = sshll.u32 [#allocation2], 4
      %s137 = int_to_ptr.vmem [resolvable:$true] %s136
      %s138 = sshll.u32 %s4, 4
      %s139 = int_to_ptr.hbm [resolvable:$true] %s138
      %144 = dma.vmem_to_hbm [thread:$0]  %s137, 768, %s139, [#allocation3], 256, 256, 16
    $region21: #{tpu_custom_call.1} parent=1 // pred_fallthru
      _
    // Predicated region
    $region22: #{tpu_custom_call.1} parent=1 // pred_check
      _
    $region23: #{tpu_custom_call.1} parent=1 // pred_check_branch
      %146 = sbr.rel (0) target = $region25
    $region24: #{tpu_custom_call.1} parent=1 // pred_region
      %148 = dma.done [#allocation3], 768
    $region25: #{tpu_custom_call.1} parent=1 // pred_fallthru
      _
    %149 = vsyncpa [#allocation3], 1

</llo_original>
